<compile_context>
chip_gen: v7x
topology: tpu7x:2x2x1
jax: 0.10.0
libtpu: 0.0.40
codegen_flags: <defaults>
</compile_context>

<pallas_src>
import jax
import jax.numpy as jnp
from jax.experimental import pallas as pl
from jax.experimental.pallas import tpu as pltpu

BN_EPS = 1e-5


def _round_up(n, m):
    return ((n + m - 1) // m) * m


# ---------------------------------------------------------------------------
# Kernel
# ---------------------------------------------------------------------------
def _channel_tv_kernel(x_ref, st_ref, w1t_ref, b1_ref, w2t_ref, b2_ref, att_ref):
    """One grid step == Bt batch elements.

    x_ref   : (Bt, C, L)   lane-dense input block, L = H*W
    st_ref  : (Bt, W, L)   summation selector, st[b, w, l] = 1 iff l % W == w
    w1t_ref : (C, 2*C4)    layer-1 weights (BN + 1/H folded), branches stacked, pre-transposed
    b1_ref  : (1, 2*C4)
    w2t_ref : (2*C4, 2*C)  block-diagonal layer-2 weights, pre-transposed
    b2_ref  : (1, 2*C)
    att_ref : (1, Bt, C)   att[0, i, c] == torch x_att[g*Bt + i, c, 0, 0]
    """
    bt_n, C, L = x_ref.shape
    W = st_ref.shape[1]

    # H-reduction on the MXU, contracting the lane-dense L axis (flash-style
    # batched einsum).  m[b, w, c] = sum_h x[b, c, h*W + w]; 1/H is folded into w1.
    m = jnp.einsum('bwl,bcl->bwc', st_ref[...], x_ref[...],
                   preferred_element_type=jnp.float32)            # (Bt, W, C)
    m2 = m.reshape(bt_n * W, C)                                   # tile-aligned merge

    # Fused layer 1 (both branches): conv1 + folded BN + ReLU.
    h = jnp.dot(m2, w1t_ref[...], preferred_element_type=jnp.float32) + b1_ref[...]
    h = jnp.maximum(h, 0.0)                                       # (Bt*W, 2*C4)

    # Fused layer 2 (block-diagonal across branches): conv2 + sigmoid.
    y = jnp.dot(h, w2t_ref[...], preferred_element_type=jnp.float32) + b2_ref[...]
    y = jax.nn.sigmoid(y)                                         # (Bt*W, 2*C)

    # torch.matmul((B,C,1,W), (B,C,W,1)) -> per-(b,c) dot product over W.
    p = y[:, :C] * y[:, C:]                                       # (Bt*W, C)
    att_ref[0] = jnp.sum(p.reshape(bt_n, W, C), axis=1)           # (Bt, C), one store


# ---------------------------------------------------------------------------
# Wrapper helpers
# ---------------------------------------------------------------------------
def _fold_params(params, H):
    """Fold eval-mode BN + 1/H into conv1, fuse both branches, pre-transpose."""
    (w1a, b1a, g1, be1, rm1, rv1, w2a, b2a,
     w1b, b1b, g2, be2, rm2, rv2, w2b, b2b) = params

    def fold1(w1, b1, g, be, rm, rv):
        scale = g * jax.lax.rsqrt(rv + BN_EPS)          # (C4, 1)
        wf = w1 * scale / H                             # conv1 weight * BN scale * (1/H)
        bf = (b1 - rm) * scale + be                     # conv1 bias folded through BN
        return wf, bf

    w1af, b1af = fold1(w1a, b1a, g1, be1, rm1, rv1)
    w1bf, b1bf = fold1(w1b, b1b, g2, be2, rm2, rv2)

    w1 = jnp.concatenate([w1af, w1bf], axis=0)          # (2*C4, C)
    b1 = jnp.concatenate([b1af, b1bf], axis=0)          # (2*C4, 1)

    C, C4 = w2a.shape
    z = jnp.zeros((C, C4), w2a.dtype)
    w2 = jnp.concatenate(
        [jnp.concatenate([w2a, z], axis=1),
         jnp.concatenate([z, w2b], axis=1)], axis=0)    # (2*C, 2*C4) block diagonal
    b2 = jnp.concatenate([b2a, b2b], axis=0)            # (2*C, 1)

    # Pre-transpose for the (rows = Bt*W, cols = channels) 2-D dot chain and
    # turn biases into lane row-vectors.
    return w1.T, b1.reshape(1, -1), w2.T, b2.reshape(1, -1)


def _choose_bt(B, C, H, W, *, itemsize=4, buffers=2,
               x_budget_bytes=8 << 20, prefer_even_grid=True):
    """Padding-aware batch-tile selection.

    The x block is (Bt, C, H*W); its VMEM footprint is
      Bt * round_up(C, 8) * round_up(H*W, 128) * itemsize   per buffer,
    double-buffered by the pipeline.  The default 8 MiB total budget stays well
    inside every generation's default scoped-VMEM limit (16 MiB v5e, 32 MiB
    v6e/v7x) with headroom for weights/intermediates, so no vmem_limit_bytes
    override is required.  For bigger shapes raise the budget and pass
    pltpu.CompilerParams(vmem_limit_bytes=...) in channel_tv_att.

    prefer_even_grid keeps G = B/Bt a multiple of 2 so the "parallel" batch
    axis load-balances across v7x's two TensorCores; set False on single-core
    v5e/v6e to allow the largest Bt (fewer ~0.35us grid-step overheads).
    """
    L = H * W
    per_batch = _round_up(C, 8) * _round_up(L, 128) * itemsize
    max_bt = max(1, x_budget_bytes // (buffers * per_batch))
    divisors = [d for d in range(1, B + 1) if B % d == 0 and d <= max_bt]
    if not divisors:
        return 1
    if prefer_even_grid and B >= 2:
        even = [d for d in divisors if (B // d) % 2 == 0]
        if even:
            return max(even)
    return max(divisors)


# ---------------------------------------------------------------------------
# Wrapper
# ---------------------------------------------------------------------------
def channel_tv_att(x, params, *, prefer_even_grid=True):
    """Pallas hot path: returns x_att of shape (B, C, 1, 1)."""
    B, C, H, W = x.shape
    L = H * W
    w1t, b1, w2t, b2 = _fold_params(params, H)

    Bt = _choose_bt(B, C, H, W, itemsize=x.dtype.itemsize,
                    prefer_even_grid=prefer_even_grid)
    G = B // Bt

    # Summation selector St[w, l] = 1 iff l % W == w, i.e. it sums over H along
    # the lane-dense L axis.  It is broadcast over the batch tile in the wrapper
    # (grid-constant input, DMA'd once) so the in-kernel reduction is a
    # flash-style batched einsum with the contraction on the minor axis of both
    # operands -- the most robust MXU pattern.
    st = (jnp.arange(L, dtype=jnp.int32)[None, :] % W ==
          jnp.arange(W, dtype=jnp.int32)[:, None]).astype(x.dtype)   # (W, L)
    st_b = jnp.broadcast_to(st[None], (Bt, W, L))

    x3 = x.reshape(B, C, L)   # contiguous reshape -> free, lane-dense blocks

    full = lambda a: pl.BlockSpec(a.shape, lambda g, _nd=a.ndim: (0,) * _nd)

    att = pl.pallas_call(
        _channel_tv_kernel,
        out_shape=jax.ShapeDtypeStruct((G, Bt, C), jnp.float32),
        grid_spec=pltpu.PrefetchScalarGridSpec(
            num_scalar_prefetch=0,
            grid=(G,),
            in_specs=[
                pl.BlockSpec((Bt, C, L), lambda g: (g, 0, 0)),
                full(st_b), full(w1t), full(b1), full(w2t), full(b2),
            ],
            out_specs=pl.BlockSpec((1, Bt, C), lambda g: (g, 0, 0)),
        ),
        compiler_params=pltpu.CompilerParams(
            dimension_semantics=("parallel",),
        ),
    )(x3, st_b, w1t, b1, w2t, b2)

    # (G, Bt, C) -> (B, C) -> (B, C, 1, 1)  (cheap XLA reshape).
    return att.reshape(B, C)[:, :, None, None]


def channel_tv_forward(x, params):
    """Matches PyTorch Channel_tv.forward: x_att is computed but x is returned.
    Under jit the unused x_att is DCE'd (same observable semantics as the torch
    module, which also discards it)."""
    x_att = channel_tv_att(x, params)
    del x_att
    return x


# ---------------------------------------------------------------------------
# Parameters + pure-JAX reference
# ---------------------------------------------------------------------------
def init_params(key, channel):
    """Deterministic parameter init matching the module's __init__ shapes."""
    C, C4 = channel, channel // 4
    ks = jax.random.split(key, 8)

    def conv_w(k, co, ci):
        # nn.Conv2d weight (co, ci, 1, 1) -> squeeze to (co, ci)
        return (0.1 * jax.random.normal(k, (co, ci))).astype(jnp.float32)

    def conv_b(k, co):
        return (0.1 * jax.random.normal(k, (co, 1))).astype(jnp.float32)

    # BatchNorm2d (eval): gamma=1, beta=0, running_mean=0, running_var=1.
    bn = lambda c: (jnp.ones((c, 1), jnp.float32), jnp.zeros((c, 1), jnp.float32),
                    jnp.zeros((c, 1), jnp.float32), jnp.ones((c, 1), jnp.float32))

    g1, be1, rm1, rv1 = bn(C4)
    g2, be2, rm2, rv2 = bn(C4)
    return (
        conv_w(ks[0], C4, C), conv_b(ks[1], C4), g1, be1, rm1, rv1,
        conv_w(ks[2], C, C4), conv_b(ks[3], C),
        conv_w(ks[4], C4, C), conv_b(ks[5], C4), g2, be2, rm2, rv2,
        conv_w(ks[6], C, C4), conv_b(ks[7], C),
    )


def _att_reference(x, params):
    """Pure-JAX reference for the Pallas hot path (unfolded math)."""
    (w1a, b1a, g1, be1, rm1, rv1, w2a, b2a,
     w1b, b1b, g2, be2, rm2, rv2, w2b, b2b) = params
    m = x.mean(axis=2)  # (B, C, W)

    def branch(w1, b1, g, be, rm, rv, w2, b2):
        h = jnp.einsum("oc,bcw->bow", w1, m) + b1
        h = (h - rm) * jax.lax.rsqrt(rv + BN_EPS) * g + be
        h = jnp.maximum(h, 0.0)
        y = jnp.einsum("oc,bcw->bow", w2, h) + b2
        return jax.nn.sigmoid(y)

    y1 = branch(w1a, b1a, g1, be1, rm1, rv1, w2a, b2a)
    y2 = branch(w1b, b1b, g2, be2, rm2, rv2, w2b, b2b)
    return jnp.sum(y1 * y2, axis=-1)[..., None, None]  # (B, C, 1, 1)


# ---------------------------------------------------------------------------
# Test
# ---------------------------------------------------------------------------
if __name__ == "__main__":
    B, C, H, W = 8, 32, 16, 16
    key = jax.random.PRNGKey(0)
    kx, kp = jax.random.split(key)
    x = jax.random.normal(kx, (B, C, H, W), dtype=jnp.float32)
    params = init_params(kp, C)

    att = jax.block_until_ready(channel_tv_att(x, params))
    out = jax.block_until_ready(channel_tv_forward(x, params))

    att_ref = _att_reference(x, params)
    assert att.shape == (B, C, 1, 1)
    assert jnp.allclose(att, att_ref, rtol=1e-4, atol=1e-4), "x_att mismatch vs reference"
    assert jnp.array_equal(out, x), "forward must return the input unchanged"

    print("KERNEL_OK")
</pallas_src>

<mosaic_0001>
module attributes {stable_mosaic.version = 11 : i64} {
  func.func @_channel_tv_kernel(%arg0: i32, %arg1: memref<4x32x256xf32, #tpu.memory_space<vmem>>, %arg2: memref<4x16x256xf32, #tpu.memory_space<vmem>>, %arg3: memref<32x16xf32, #tpu.memory_space<vmem>>, %arg4: memref<1x16xf32, #tpu.memory_space<vmem>>, %arg5: memref<16x64xf32, #tpu.memory_space<vmem>>, %arg6: memref<1x64xf32, #tpu.memory_space<vmem>>, %arg7: memref<1x4x32xf32, #tpu.memory_space<vmem>>) attributes {dimension_semantics = [#tpu.dimension_semantics<parallel>], iteration_bounds = array<i64: 2>, scalar_prefetch = 0 : i64, scratch_operands = 0 : i64, tpu.core_type = #tpu.core_type<tc>, window_params = [{transform_indices = @transform_0, window_bounds = array<i64: 4, 32, 256>}, {pipeline_mode = #tpu.pipeline_mode<synchronous>, transform_indices = @transform_1, window_bounds = array<i64: 4, 16, 256>}, {pipeline_mode = #tpu.pipeline_mode<synchronous>, transform_indices = @transform_2, window_bounds = array<i64: 32, 16>}, {pipeline_mode = #tpu.pipeline_mode<synchronous>, transform_indices = @transform_3, window_bounds = array<i64: 1, 16>}, {pipeline_mode = #tpu.pipeline_mode<synchronous>, transform_indices = @transform_4, window_bounds = array<i64: 16, 64>}, {pipeline_mode = #tpu.pipeline_mode<synchronous>, transform_indices = @transform_5, window_bounds = array<i64: 1, 64>}, {transform_indices = @transform_6, window_bounds = array<i64: 1, 4, 32>}]} {
    %c0 = arith.constant 0 : index
    %c0_0 = arith.constant 0 : index
    %c0_1 = arith.constant 0 : index
    %0 = vector.load %arg2[%c0, %c0_0, %c0_1] : memref<4x16x256xf32, #tpu.memory_space<vmem>>, vector<4x16x256xf32>
    %c0_2 = arith.constant 0 : index
    %c0_3 = arith.constant 0 : index
    %c0_4 = arith.constant 0 : index
    %1 = vector.load %arg1[%c0_2, %c0_3, %c0_4] : memref<4x32x256xf32, #tpu.memory_space<vmem>>, vector<4x32x256xf32>
    "tpu.trace_start"() <{level = 10 : i32, message = "bwl,bcl->bwc"}> : () -> ()
    %cst = arith.constant dense<0.000000e+00> : vector<4x16x32xf32>
    %2 = tpu.matmul %0, %1, %cst {dimension_numbers = #tpu.dot_dimension_numbers<[2], [2], [1], [1], [0, 0, 0, 1, 1, 1], [0], [0]>} : vector<4x16x256xf32>, vector<4x32x256xf32>, vector<4x16x32xf32> -> vector<4x16x32xf32>
    "tpu.trace_stop"() : () -> ()
    %3 = vector.shape_cast %2 : vector<4x16x32xf32> to vector<64x32xf32>
    %c0_5 = arith.constant 0 : index
    %c0_6 = arith.constant 0 : index
    %4 = vector.load %arg3[%c0_5, %c0_6] : memref<32x16xf32, #tpu.memory_space<vmem>>, vector<32x16xf32>
    %cst_7 = arith.constant dense<0.000000e+00> : vector<64x16xf32>
    %5 = tpu.matmul %3, %4, %cst_7 {dimension_numbers = #tpu.dot_dimension_numbers<[1], [0], [0], [1], [0, 0, 1, 1], [], []>} : vector<64x32xf32>, vector<32x16xf32>, vector<64x16xf32> -> vector<64x16xf32>
    %c0_8 = arith.constant 0 : index
    %c0_9 = arith.constant 0 : index
    %6 = vector.load %arg4[%c0_8, %c0_9] : memref<1x16xf32, #tpu.memory_space<vmem>>, vector<1x16xf32>
    %7 = vector.broadcast %6 : vector<1x16xf32> to vector<64x16xf32>
    %8 = arith.addf %5, %7 : vector<64x16xf32>
    %cst_10 = arith.constant 0.000000e+00 : f32
    %9 = vector.broadcast %cst_10 : f32 to vector<64x16xf32>
    %10 = arith.maximumf %8, %9 : vector<64x16xf32>
    %c0_11 = arith.constant 0 : index
    %c0_12 = arith.constant 0 : index
    %11 = vector.load %arg5[%c0_11, %c0_12] : memref<16x64xf32, #tpu.memory_space<vmem>>, vector<16x64xf32>
    %cst_13 = arith.constant dense<0.000000e+00> : vector<64x64xf32>
    %12 = tpu.matmul %10, %11, %cst_13 {dimension_numbers = #tpu.dot_dimension_numbers<[1], [0], [0], [1], [0, 0, 1, 1], [], []>} : vector<64x16xf32>, vector<16x64xf32>, vector<64x64xf32> -> vector<64x64xf32>
    %c0_14 = arith.constant 0 : index
    %c0_15 = arith.constant 0 : index
    %13 = vector.load %arg6[%c0_14, %c0_15] : memref<1x64xf32, #tpu.memory_space<vmem>>, vector<1x64xf32>
    %14 = vector.broadcast %13 : vector<1x64xf32> to vector<64x64xf32>
    %15 = arith.addf %12, %14 : vector<64x64xf32>
    %16 = arith.negf %15 : vector<64x64xf32>
    %17 = math.exp %16 : vector<64x64xf32>
    %cst_16 = arith.constant 1.000000e+00 : f32
    %18 = vector.broadcast %cst_16 : f32 to vector<64x64xf32>
    %19 = arith.addf %18, %17 : vector<64x64xf32>
    %20 = arith.divf %18, %19 : vector<64x64xf32>
    %21 = vector.extract_strided_slice %20 {offsets = [0, 0], sizes = [64, 32], strides = [1, 1]} : vector<64x64xf32> to vector<64x32xf32>
    %22 = vector.extract_strided_slice %20 {offsets = [0, 32], sizes = [64, 32], strides = [1, 1]} : vector<64x64xf32> to vector<64x32xf32>
    %23 = arith.mulf %21, %22 : vector<64x32xf32>
    %24 = vector.shape_cast %23 : vector<64x32xf32> to vector<4x16x32xf32>
    %cst_17 = arith.constant dense<0.000000e+00> : vector<4x32xf32>
    %25 = vector.multi_reduction <add>, %24, %cst_17 [1] : vector<4x16x32xf32> to vector<4x32xf32>
    %c0_18 = arith.constant 0 : index
    %c0_19 = arith.constant 0 : index
    %c0_20 = arith.constant 0 : index
    %26 = vector.load %arg7[%c0_18, %c0_19, %c0_20] : memref<1x4x32xf32, #tpu.memory_space<vmem>>, vector<1x4x32xf32>
    %27 = vector.shape_cast %26 : vector<1x4x32xf32> to vector<4x32xf32>
    %28 = vector.shape_cast %25 : vector<4x32xf32> to vector<1x4x32xf32>
    tpu.vector_store %arg7[%c0_18, %c0_19, %c0_20], %28 {strides = array<i32>} : memref<1x4x32xf32, #tpu.memory_space<vmem>>, vector<1x4x32xf32>,
    return
  }
  func.func @transform_0(%arg0: i32) -> (i32, i32, i32) {
    %c0_i32 = arith.constant 0 : i32
    %c0_i32_0 = arith.constant 0 : i32
    %c0_i32_1 = arith.constant 0 : i32
    return %arg0, %c0_i32, %c0_i32_0 : i32, i32, i32
  }
  func.func @transform_1(%arg0: i32) -> (i32, i32, i32) {
    %c0_i32 = arith.constant 0 : i32
    %c0_i32_0 = arith.constant 0 : i32
    %c0_i32_1 = arith.constant 0 : i32
    %c0_i32_2 = arith.constant 0 : i32
    return %c0_i32, %c0_i32_0, %c0_i32_1 : i32, i32, i32
  }
  func.func @transform_2(%arg0: i32) -> (i32, i32) {
    %c0_i32 = arith.constant 0 : i32
    %c0_i32_0 = arith.constant 0 : i32
    %c0_i32_1 = arith.constant 0 : i32
    return %c0_i32, %c0_i32_0 : i32, i32
  }
  func.func @transform_3(%arg0: i32) -> (i32, i32) {
    %c0_i32 = arith.constant 0 : i32
    %c0_i32_0 = arith.constant 0 : i32
    %c0_i32_1 = arith.constant 0 : i32
    return %c0_i32, %c0_i32_0 : i32, i32
  }
  func.func @transform_4(%arg0: i32) -> (i32, i32) {
    %c0_i32 = arith.constant 0 : i32
    %c0_i32_0 = arith.constant 0 : i32
    %c0_i32_1 = arith.constant 0 : i32
    return %c0_i32, %c0_i32_0 : i32, i32
  }
  func.func @transform_5(%arg0: i32) -> (i32, i32) {
    %c0_i32 = arith.constant 0 : i32
    %c0_i32_0 = arith.constant 0 : i32
    %c0_i32_1 = arith.constant 0 : i32
    return %c0_i32, %c0_i32_0 : i32, i32
  }
  func.func @transform_6(%arg0: i32) -> (i32, i32, i32) {
    %c0_i32 = arith.constant 0 : i32
    %c0_i32_0 = arith.constant 0 : i32
    %c0_i32_1 = arith.constant 0 : i32
    return %arg0, %c0_i32, %c0_i32_0 : i32, i32, i32
  }
}

</mosaic_0001>

<llo_original>
// kernel: tpu_custom_call.1
$region0: #{tpu_custom_call.1}
  #allocation0 [shape = 'u32[]', space=smem, size = 0x4, offset = 0x4, fixed_abs, tag = 'smem constant byte address 0x4 - core index']
  #allocation1 [shape = 'u32[144,128]{1,0:T(1,128)}', space=vmem, size = 0x12000, scoped, tag = 'internal scratch']
  %s0 = inlined_call_operand.hbm [shape: f32[8,32,256], index: 0, kind: input, shape index: {}]
  %s1 = inlined_call_operand.hbm [shape: f32[4,16,256], index: 1, kind: input, shape index: {}]
  %s2 = inlined_call_operand.vmem [shape: f32[32,16], index: 2, kind: input, shape index: {}]
  %s3 = inlined_call_operand.vmem [shape: f32[1,16], index: 3, kind: input, shape index: {}]
  %s4 = inlined_call_operand.vmem [shape: f32[16,64], index: 4, kind: input, shape index: {}]
  %s5 = inlined_call_operand.vmem [shape: f32[1,64], index: 5, kind: input, shape index: {}]
  %s6 = inlined_call_operand.hbm [shape: f32[2,4,32], index: 6, kind: output, shape index: {}]
  %s7 = sld [smem:[#allocation0]]
  $region65: #{tpu_custom_call.1} parent=0
    _
  %s9 = ssub.s32 1, %s7
  %s10 = scalar_select 0, %s9, %s7
  $region1: #{tpu_custom_call.1} parent=0
    #allocation2 [shape = 'u8[262144]{0}', space=vmem, size = 0x40000, scoped, tag = 'input window, operand 0']
    #allocation3 [shape = 's32[2]{0}', space=sflag, size = 0x8, scoped, tag = 'scoped memory for tpu_custom_call.1']
    #allocation4 [shape = 's32[2]{0}', space=sflag, size = 0x8, scoped, tag = 'scoped memory for tpu_custom_call.1']
    #allocation5 [shape = 'u8[65536]{0}', space=vmem, size = 0x10000, scoped, tag = 'input window, operand 1, single buffered']
    #allocation6 [shape = 's32[1]{0}', space=sflag, size = 0x4, scoped, tag = 'scoped memory for tpu_custom_call.1']
    #allocation7 [shape = 'u8[4096]{0}', space=vmem, size = 0x1000, scoped, tag = 'output window, operand 0']
    %11 = vsyncpa [#allocation3], 0
    %s12 = scalar_lea.sflag [#allocation3], 1
    %13 = vsyncpa %s12, 0
    %14 = vsyncpa [#allocation6], 0
    %15 = vsyncpa [#allocation4], 0
    %s16 = scalar_lea.sflag [#allocation4], 1
    %17 = vsyncpa %s16, 0
    loop: start=0, step=1, limit=4
    $region2: #{tpu_custom_call.1} parent=1 // loop_pre_header
      _
    $region3: #{tpu_custom_call.1} parent=1 // loop_header
      %s19 = sphi 0, %s23
      %p20 = scmp.ge.s32.totalorder %s19, 4
      %s29 = sphi 0, %s31
      %s32 = sphi 0, %s29
      %s33 = sphi 0, %s32
      %s49 = sphi 0, %s33
      %s53 = sphi 0, %s53
      %s55 = sphi 0, %s53
      %s56 = sphi 0, %s55
      %s70 = sphi 0, %s56
      %s74 = sphi 0, %s74
      %s76 = sphi 0, %s74
      %s77 = sphi 0, %s76
      %s91 = sphi 0, %s77
      %s95 = sphi 0, %s95
      %s97 = sphi 0, %s95
      %s98 = sphi 0, %s97
      %s112 = sphi 0, %s98
      %s116 = sphi 0, %s116
      %s118 = sphi 0, %s116
      %s119 = sphi 0, %s118
      %s133 = sphi 0, %s119
      %s137 = sphi 0, %s137
      %s139 = sphi 0, %s137
      %s140 = sphi 0, %s139
      %s154 = sphi 0, %s140
      %s160 = sphi 0, %s162
      %s163 = sphi 0, %s160
      %s164 = sphi 0, %s163
      %s180 = sphi 0, %s164
    $region4: #{tpu_custom_call.1} parent=1 // loop_header_branch
      %22 = sbr.rel (%p20) target = $region8
    $region5: #{tpu_custom_call.1} parent=1 // loop_body
      %s24 = ssub.s32 %s19, 1
      %s25 = ssub.s32 %s19, 2
      %s26 = sadd.s32 %s19, 1
      %s27 = ssub.s32 %s19, %s26
      %p28 = scmp.eq.s32.totalorder %s27, 0
      %s30 = sadd.s32 %s29, 1
      %s31 = scalar_select %p28, %s29, %s30
      %p34 = pneg %p28
      %p35 = scmp.eq.s32.totalorder %s19, 1
      %p36 = por %p34, %p35
      %p37 = scmp.ne.s32.totalorder %s29, %s32
      %p38 = scmp.eq.s32.totalorder %s19, 0
      %p39 = por %p37, %p38
      %p40 = scmp.ne.s32.totalorder %s29, %s32
      %p41 = scmp.eq.s32.totalorder %s24, 1
      %p42 = por %p40, %p41
      %p43 = scmp.ne.s32.totalorder %s32, %s33
      %p44 = scmp.eq.s32.totalorder %s24, 0
      %p45 = por %p43, %p44
      %p46 = scmp.ne.s32.totalorder %s32, %s33
      %p47 = scmp.eq.s32.totalorder %s25, 1
      %p48 = por %p46, %p47
      %p50 = scmp.ne.s32.totalorder %s33, %s49
      %p51 = scmp.eq.s32.totalorder %s25, 0
      %p52 = por %p50, %p51
      %s54 = sadd.s32 %s53, 1
      %p57 = scmp.eq.s32.totalorder %s19, 1
      %p58 = scmp.ne.s32.totalorder %s53, %s55
      %p59 = scmp.eq.s32.totalorder %s19, 0
      %p60 = por %p58, %p59
      %p61 = scmp.ne.s32.totalorder %s53, %s55
      %p62 = scmp.eq.s32.totalorder %s24, 1
      %p63 = por %p61, %p62
      %p64 = scmp.ne.s32.totalorder %s55, %s56
      %p65 = scmp.eq.s32.totalorder %s24, 0
      %p66 = por %p64, %p65
      %p67 = scmp.ne.s32.totalorder %s55, %s56
      %p68 = scmp.eq.s32.totalorder %s25, 1
      %p69 = por %p67, %p68
      %p71 = scmp.ne.s32.totalorder %s56, %s70
      %p72 = scmp.eq.s32.totalorder %s25, 0
      %p73 = por %p71, %p72
      %s75 = sadd.s32 %s74, 1
      %p78 = scmp.eq.s32.totalorder %s19, 1
      %p79 = scmp.ne.s32.totalorder %s74, %s76
      %p80 = scmp.eq.s32.totalorder %s19, 0
      %p81 = por %p79, %p80
      %p82 = scmp.ne.s32.totalorder %s74, %s76
      %p83 = scmp.eq.s32.totalorder %s24, 1
      %p84 = por %p82, %p83
      %p85 = scmp.ne.s32.totalorder %s76, %s77
      %p86 = scmp.eq.s32.totalorder %s24, 0
      %p87 = por %p85, %p86
      %p88 = scmp.ne.s32.totalorder %s76, %s77
      %p89 = scmp.eq.s32.totalorder %s25, 1
      %p90 = por %p88, %p89
      %p92 = scmp.ne.s32.totalorder %s77, %s91
      %p93 = scmp.eq.s32.totalorder %s25, 0
      %p94 = por %p92, %p93
      %s96 = sadd.s32 %s95, 1
      %p99 = scmp.eq.s32.totalorder %s19, 1
      %p100 = scmp.ne.s32.totalorder %s95, %s97
      %p101 = scmp.eq.s32.totalorder %s19, 0
      %p102 = por %p100, %p101
      %p103 = scmp.ne.s32.totalorder %s95, %s97
      %p104 = scmp.eq.s32.totalorder %s24, 1
      %p105 = por %p103, %p104
      %p106 = scmp.ne.s32.totalorder %s97, %s98
      %p107 = scmp.eq.s32.totalorder %s24, 0
      %p108 = por %p106, %p107
      %p109 = scmp.ne.s32.totalorder %s97, %s98
      %p110 = scmp.eq.s32.totalorder %s25, 1
      %p111 = por %p109, %p110
      %p113 = scmp.ne.s32.totalorder %s98, %s112
      %p114 = scmp.eq.s32.totalorder %s25, 0
      %p115 = por %p113, %p114
      %s117 = sadd.s32 %s116, 1
      %p120 = scmp.eq.s32.totalorder %s19, 1
      %p121 = scmp.ne.s32.totalorder %s116, %s118
      %p122 = scmp.eq.s32.totalorder %s19, 0
      %p123 = por %p121, %p122
      %p124 = scmp.ne.s32.totalorder %s116, %s118
      %p125 = scmp.eq.s32.totalorder %s24, 1
      %p126 = por %p124, %p125
      %p127 = scmp.ne.s32.totalorder %s118, %s119
      %p128 = scmp.eq.s32.totalorder %s24, 0
      %p129 = por %p127, %p128
      %p130 = scmp.ne.s32.totalorder %s118, %s119
      %p131 = scmp.eq.s32.totalorder %s25, 1
      %p132 = por %p130, %p131
      %p134 = scmp.ne.s32.totalorder %s119, %s133
      %p135 = scmp.eq.s32.totalorder %s25, 0
      %p136 = por %p134, %p135
      %s138 = sadd.s32 %s137, 1
      %p141 = scmp.eq.s32.totalorder %s19, 1
      %p142 = scmp.ne.s32.totalorder %s137, %s139
      %p143 = scmp.eq.s32.totalorder %s19, 0
      %p144 = por %p142, %p143
      %p145 = scmp.ne.s32.totalorder %s137, %s139
      %p146 = scmp.eq.s32.totalorder %s24, 1
      %p147 = por %p145, %p146
      %p148 = scmp.ne.s32.totalorder %s139, %s140
      %p149 = scmp.eq.s32.totalorder %s24, 0
      %p150 = por %p148, %p149
      %p151 = scmp.ne.s32.totalorder %s139, %s140
      %p152 = scmp.eq.s32.totalorder %s25, 1
      %p153 = por %p151, %p152
      %p155 = scmp.ne.s32.totalorder %s140, %s154
      %p156 = scmp.eq.s32.totalorder %s25, 0
      %p157 = por %p155, %p156
      %s158 = ssub.s32 %s19, %s26
      %p159 = scmp.eq.s32.totalorder %s158, 0
      %s161 = sadd.s32 %s160, 1
      %s162 = scalar_select %p159, %s160, %s161
      %p165 = pneg %p159
      %p166 = scmp.eq.s32.totalorder %s19, 1
      %p167 = por %p165, %p166
      %p168 = scmp.ne.s32.totalorder %s160, %s163
      %p169 = scmp.eq.s32.totalorder %s19, 0
      %p170 = por %p168, %p169
      %p171 = scmp.ne.s32.totalorder %s160, %s163
      %p172 = scmp.eq.s32.totalorder %s24, 1
      %p173 = por %p171, %p172
      %p174 = scmp.ne.s32.totalorder %s163, %s164
      %p175 = scmp.eq.s32.totalorder %s24, 0
      %p176 = por %p174, %p175
      %p177 = scmp.ne.s32.totalorder %s163, %s164
      %p178 = scmp.eq.s32.totalorder %s25, 1
      %p179 = por %p177, %p178
      %p181 = scmp.ne.s32.totalorder %s164, %s180
      %p182 = scmp.eq.s32.totalorder %s25, 0
      %p183 = por %p181, %p182
      %p184 = scmp.le.s32.totalorder 1, %s19
      %p185 = scmp.lt.s32.totalorder %s19, 3
      %p186 = pnand %p184, %p185
      %p187 = pneg %p186
      // Predicated region
      $region9: #{tpu_custom_call.1} parent=5 // pred_check
        _
      $region10: #{tpu_custom_call.1} parent=5 // pred_check_branch
        %189 = sbr.rel (%p186) target = $region12
      $region11: #{tpu_custom_call.1} parent=5 // pred_region
        %s190 = ssub.s32 %s19, 1
        // Predicated region
        $region13: #{tpu_custom_call.1} parent=11 // pred_check
          %p191 = pneg %p66
        $region14: #{tpu_custom_call.1} parent=11 // pred_check_branch
          %193 = sbr.rel (%p191) target = $region16
        $region15: #{tpu_custom_call.1} parent=11 // pred_region
          %s195 = ssub.s32 2048, 2048
          %196 = vsyncadd [#allocation6], %s195
          %s197 = sshll.u32 [#allocation5], 4
          %s198 = int_to_ptr.vmem [resolvable:$true] %s197
          %203 = dma.hbm_to_vmem [thread:$0]  %s1, 2048, %s198, [#allocation6], 256, 256, 16
        $region16: #{tpu_custom_call.1} parent=11 // pred_fallthru
          _
        // Predicated region
        $region17: #{tpu_custom_call.1} parent=11 // pred_check
          %p204 = pneg %p87
        $region18: #{tpu_custom_call.1} parent=11 // pred_check_branch
          %206 = sbr.rel (%p204) target = $region20
        $region19: #{tpu_custom_call.1} parent=11 // pred_region
          _
        $region20: #{tpu_custom_call.1} parent=11 // pred_fallthru
          _
        // Predicated region
        $region21: #{tpu_custom_call.1} parent=11 // pred_check
          %p207 = pneg %p108
        $region22: #{tpu_custom_call.1} parent=11 // pred_check_branch
          %209 = sbr.rel (%p207) target = $region24
        $region23: #{tpu_custom_call.1} parent=11 // pred_region
          _
        $region24: #{tpu_custom_call.1} parent=11 // pred_fallthru
          _
        // Predicated region
        $region25: #{tpu_custom_call.1} parent=11 // pred_check
          %p210 = pneg %p129
        $region26: #{tpu_custom_call.1} parent=11 // pred_check_branch
          %212 = sbr.rel (%p210) target = $region28
        $region27: #{tpu_custom_call.1} parent=11 // pred_region
          _
        $region28: #{tpu_custom_call.1} parent=11 // pred_fallthru
          _
        // Predicated region
        $region29: #{tpu_custom_call.1} parent=11 // pred_check
          %p213 = pneg %p150
        $region30: #{tpu_custom_call.1} parent=11 // pred_check_branch
          %215 = sbr.rel (%p213) target = $region32
        $region31: #{tpu_custom_call.1} parent=11 // pred_region
          _
        $region32: #{tpu_custom_call.1} parent=11 // pred_fallthru
          _
      $region12: #{tpu_custom_call.1} parent=5 // pred_fallthru
        _
      %p216 = scmp.lt.s32.totalorder %s19, 2
      // Predicated region
      $region33: #{tpu_custom_call.1} parent=5 // pred_check
        %p217 = pneg %p216
      $region34: #{tpu_custom_call.1} parent=5 // pred_check_branch
        %219 = sbr.rel (%p217) target = $region36
      $region35: #{tpu_custom_call.1} parent=5 // pred_region
        // Predicated region
        $region37: #{tpu_custom_call.1} parent=35 // pred_check
          %p220 = pneg %p39
        $region38: #{tpu_custom_call.1} parent=35 // pred_check_branch
          %222 = sbr.rel (%p220) target = $region40
        $region39: #{tpu_custom_call.1} parent=35 // pred_region
          %s223 = sand.u32 %s29, 1
          %s224 = scalar_lea.sflag [#allocation3], %s223
          %s225 = sand.u32 %s29, 1
          %s226 = smul.addr %s225, 256
          %s227 = scalar_lea.vmem [#allocation2], %s226
          %s228 = smul.u32 4, %s19
          %s230 = ssub.s32 4096, 4096
          %231 = vsyncadd %s224, %s230
          %s232 = smul.addr %s228, 8
          %s233 = smul.addr %s232, 128
          %s234 = scalar_lea.hbm %s0, %s233
          %s235 = sshll.u32 %s227, 4
          %s236 = int_to_ptr.vmem [resolvable:$true] %s235
          %241 = dma.hbm_to_vmem [thread:$0]  %s234, 4096, %s236, %s224, 256, 256, 16
        $region40: #{tpu_custom_call.1} parent=35 // pred_fallthru
          _
      $region36: #{tpu_custom_call.1} parent=5 // pred_fallthru
        _
      %p242 = scmp.le.s32.totalorder 1, %s19
      %p243 = scmp.lt.s32.totalorder %s19, 3
      %p244 = pnand %p242, %p243
      %p245 = pneg %p244
      // Predicated region
      $region41: #{tpu_custom_call.1} parent=5 // pred_check
        _
      $region42: #{tpu_custom_call.1} parent=5 // pred_check_branch
        %247 = sbr.rel (%p244) target = $region44
      $region43: #{tpu_custom_call.1} parent=5 // pred_region
        %s248 = ssub.s32 %s19, 1
        %s249 = sand.u32 %s32, 1
        %s250 = scalar_lea.sflag [#allocation3], %s249
        %s251 = sand.u32 %s32, 1
        %s252 = smul.addr %s251, 256
        %s253 = scalar_lea.vmem [#allocation2], %s252
        // Predicated region
        $region45: #{tpu_custom_call.1} parent=43 // pred_check
          %p254 = pneg %p45
        $region46: #{tpu_custom_call.1} parent=43 // pred_check_branch
          %256 = sbr.rel (%p254) target = $region48
        $region47: #{tpu_custom_call.1} parent=43 // pred_region
          %257 = dma.done %s250, 4096
        $region48: #{tpu_custom_call.1} parent=43 // pred_fallthru
          _
        // Predicated region
        $region49: #{tpu_custom_call.1} parent=43 // pred_check
          %p258 = pneg %p66
        $region50: #{tpu_custom_call.1} parent=43 // pred_check_branch
          %260 = sbr.rel (%p258) target = $region52
        $region51: #{tpu_custom_call.1} parent=43 // pred_region
          %261 = dma.done [#allocation6], 2048
        $region52: #{tpu_custom_call.1} parent=43 // pred_fallthru
          _
        %s262 = sand.u32 %s32, 1
        %s263 = scalar_lea.sflag [#allocation3], %s262
        %s264 = sand.u32 %s32, 1
        %s265 = smul.addr %s264, 256
        %s266 = scalar_lea.vmem [#allocation2], %s265
        %p267 = pneg %p45
        %p268 = pneg %p42
        %p269 = pneg %p66
        %p270 = pneg %p63
        %p271 = pneg %p87
        %p272 = pneg %p84
        %p273 = pneg %p108
        %p274 = pneg %p105
        %p275 = pneg %p129
        %p276 = pneg %p126
        %p277 = pneg %p150
        %p278 = pneg %p147
        %p279 = pneg %p176
        %p280 = pneg %p173
        %s281 = sand.u32 %s163, 1
        %s282 = scalar_lea.sflag [#allocation4], %s281
        %s283 = sand.u32 %s163, 1
        %s284 = smul.addr %s283, 4
        %s285 = scalar_lea.vmem [#allocation7], %s284
        %s286 = smul.u32 4, %s24
        %v287 = vld [vmem:[#allocation5] sm:$0xff]
        %v288 = vld [vmem:[#allocation5 + $0x8] sm:$0xff]
        %v289 = vld [vmem:[#allocation5 + $0x10] sm:$0xff]
        %v290 = vld [vmem:[#allocation5 + $0x18] sm:$0xff]
        %v291 = vld [vmem:[#allocation5 + $0x20] sm:$0xff]
        %v292 = vld [vmem:[#allocation5 + $0x28] sm:$0xff]
        %v293 = vld [vmem:[#allocation5 + $0x30] sm:$0xff]
        %v294 = vld [vmem:[#allocation5 + $0x38] sm:$0xff]
        %v295 = vld [vmem:[#allocation5 + $0x40] sm:$0xff]
        %v296 = vld [vmem:[#allocation5 + $0x48] sm:$0xff]
        %v297 = vld [vmem:[#allocation5 + $0x50] sm:$0xff]
        %v298 = vld [vmem:[#allocation5 + $0x58] sm:$0xff]
        %v299 = vld [vmem:[#allocation5 + $0x60] sm:$0xff]
        %v300 = vld [vmem:[#allocation5 + $0x68] sm:$0xff]
        %v301 = vld [vmem:[#allocation5 + $0x70] sm:$0xff]
        %v302 = vld [vmem:[#allocation5 + $0x78] sm:$0xff]
        %v303 = vld [vmem:[%s253] sm:$0xff]
        %v304 = vld [vmem:[%s253 + $0x8] sm:$0xff]
        %v305 = vld [vmem:[%s253 + $0x10] sm:$0xff]
        %v306 = vld [vmem:[%s253 + $0x18] sm:$0xff]
        %v307 = vld [vmem:[%s253 + $0x20] sm:$0xff]
        %v308 = vld [vmem:[%s253 + $0x28] sm:$0xff]
        %v309 = vld [vmem:[%s253 + $0x30] sm:$0xff]
        %v310 = vld [vmem:[%s253 + $0x38] sm:$0xff]
        %v311 = vld [vmem:[%s253 + $0x40] sm:$0xff]
        %v312 = vld [vmem:[%s253 + $0x48] sm:$0xff]
        %v313 = vld [vmem:[%s253 + $0x50] sm:$0xff]
        %v314 = vld [vmem:[%s253 + $0x58] sm:$0xff]
        %v315 = vld [vmem:[%s253 + $0x60] sm:$0xff]
        %v316 = vld [vmem:[%s253 + $0x68] sm:$0xff]
        %v317 = vld [vmem:[%s253 + $0x70] sm:$0xff]
        %v318 = vld [vmem:[%s253 + $0x78] sm:$0xff]
        %v319 = vld [vmem:[%s253 + $0x80] sm:$0xff]
        %v320 = vld [vmem:[%s253 + $0x88] sm:$0xff]
        %v321 = vld [vmem:[%s253 + $0x90] sm:$0xff]
        %v322 = vld [vmem:[%s253 + $0x98] sm:$0xff]
        %v323 = vld [vmem:[%s253 + $0xa0] sm:$0xff]
        %v324 = vld [vmem:[%s253 + $0xa8] sm:$0xff]
        %v325 = vld [vmem:[%s253 + $0xb0] sm:$0xff]
        %v326 = vld [vmem:[%s253 + $0xb8] sm:$0xff]
        %v327 = vld [vmem:[%s253 + $0xc0] sm:$0xff]
        %v328 = vld [vmem:[%s253 + $0xc8] sm:$0xff]
        %v329 = vld [vmem:[%s253 + $0xd0] sm:$0xff]
        %v330 = vld [vmem:[%s253 + $0xd8] sm:$0xff]
        %v331 = vld [vmem:[%s253 + $0xe0] sm:$0xff]
        %v332 = vld [vmem:[%s253 + $0xe8] sm:$0xff]
        %v333 = vld [vmem:[%s253 + $0xf0] sm:$0xff]
        %v334 = vld [vmem:[%s253 + $0xf8] sm:$0xff]
        %335 = vmatprep.subr.mxu0 %v304
        %336 = vmatpush1.xpose.msra.mxu0 %v303
        %337 = vmatprep.subr.mxu0 %v306
        %338 = vmatpush1.xpose.msra.mxu0 %v305
        %339 = vmatprep.subr.mxu0 %v308
        %340 = vmatpush1.xpose.msra.mxu0 %v307
        %341 = vmatprep.subr.mxu0 %v310
        %342 = vmatpush1.xpose.msra.mxu0 %v309
        %343 = vmatprep.subr.mxu0 0.0
        %344 = vmatpush1.xpose.msra.mxu0 0.0
        %345 = vmatprep.subr.mxu0 0.0
        %346 = vmatpush1.xpose.msra.mxu0 0.0
        %347 = vmatprep.subr.mxu0 0.0
        %348 = vmatpush1.xpose.msra.mxu0 0.0
        %349 = vmatprep.subr.mxu0 0.0
        %350 = vmatpush1.xpose.msra.mxu0 0.0
        %351 = vmatprep.subr.mxu0 0.0
        %352 = vmatpush1.xpose.msra.mxu0 0.0
        %353 = vmatprep.subr.mxu0 0.0
        %354 = vmatpush1.xpose.msra.mxu0 0.0
        %355 = vmatprep.subr.mxu0 0.0
        %356 = vmatpush1.xpose.msra.mxu0 0.0
        %357 = vmatprep.subr.mxu0 0.0
        %358 = vmatpush1.xpose.msra.mxu0 0.0
        %359 = vmatprep.subr.mxu0 0.0
        %360 = vmatpush1.xpose.msra.mxu0 0.0
        %361 = vmatprep.subr.mxu0 0.0
        %362 = vmatpush1.xpose.msra.mxu0 0.0
        %363 = vmatprep.subr.mxu0 0.0
        %364 = vmatpush1.xpose.msra.mxu0 0.0
        %365 = vmatprep.subr.mxu0 0.0
        %366 = vmatpush1.xpose.msra.mxu0 0.0
        %367 = vmatprep.subr.mxu0 0.0
        %368 = vmatpush1.xpose.msra.mxu0 0.0
        %369 = vmatprep.subr.mxu0 0.0
        %370 = vmatpush1.xpose.msra.mxu0 0.0
        %371 = vmatprep.subr.mxu0 0.0
        %372 = vmatpush1.xpose.msra.mxu0 0.0
        %373 = vmatprep.subr.mxu0 0.0
        %374 = vmatpush1.xpose.msra.mxu0 0.0
        %375 = vmatprep.subr.mxu0 0.0
        %376 = vmatpush1.xpose.msra.mxu0 0.0
        %377 = vmatprep.subr.mxu0 0.0
        %378 = vmatpush1.xpose.msra.mxu0 0.0
        %379 = vmatprep.subr.mxu0 0.0
        %380 = vmatpush1.xpose.msra.mxu0 0.0
        %381 = vmatprep.subr.mxu0 0.0
        %382 = vmatpush1.xpose.msra.mxu0 0.0
        %383 = vmatprep.subr.mxu0 0.0
        %384 = vmatpush1.xpose.msra.mxu0 0.0
        %385 = vmatprep.subr.mxu0 0.0
        %386 = vmatpush1.xpose.msra.mxu0 0.0
        %387 = vmatprep.subr.mxu0 0.0
        %388 = vmatpush1.xpose.msra.mxu0 0.0
        %389 = vmatprep.subr.mxu0 0.0
        %390 = vmatpush1.xpose.msra.mxu0 0.0
        %391 = vmatprep.subr.mxu0 0.0
        %392 = vmatpush1.xpose.msra.mxu0 0.0
        %393 = vmatprep.subr.mxu0 0.0
        %394 = vmatpush1.xpose.msra.mxu0 0.0
        %395 = vmatprep.subr.mxu0 0.0
        %396 = vmatpush1.xpose.msra.mxu0 0.0
        %397 = vmatprep.subr.mxu0 0.0
        %398 = vmatpush1.xpose.msra.mxu0 0.0
        %399 = vmatprep.mubr.f32.mxu0 %v288
        %400 = vmatmul.mubr.f32.gmra.mrb[0].mxu0 %v287
        %v401 = vpop.f32.mrb[0].mxu0
        %v402 = vadd.f32 0.0, %v401
        %v403 = vpop.f32.mrb[0].mxu0
        %404 = vmatprep.mubr.f32.mxu0 %v290
        %405 = vmatmul.mubr.f32.gmra.mrb[0].mxu0 %v289
        %v406 = vpop.f32.mrb[0].mxu0
        %v407 = vadd.f32 0.0, %v406
        %v408 = vpop.f32.mrb[0].mxu0
        %409 = vdwg.mxu0
        %410 = vmatprep.subr.mxu0 %v312
        %411 = vmatpush1.xpose.msra.mxu0 %v311
        %412 = vmatprep.subr.mxu0 %v314
        %413 = vmatpush1.xpose.msra.mxu0 %v313
        %414 = vmatprep.subr.mxu0 %v316
        %415 = vmatpush1.xpose.msra.mxu0 %v315
        %416 = vmatprep.subr.mxu0 %v318
        %417 = vmatpush1.xpose.msra.mxu0 %v317
        %418 = vmatprep.subr.mxu0 0.0
        %419 = vmatpush1.xpose.msra.mxu0 0.0
        %420 = vmatprep.subr.mxu0 0.0
        %421 = vmatpush1.xpose.msra.mxu0 0.0
        %422 = vmatprep.subr.mxu0 0.0
        %423 = vmatpush1.xpose.msra.mxu0 0.0
        %424 = vmatprep.subr.mxu0 0.0
        %425 = vmatpush1.xpose.msra.mxu0 0.0
        %426 = vmatprep.subr.mxu0 0.0
        %427 = vmatpush1.xpose.msra.mxu0 0.0
        %428 = vmatprep.subr.mxu0 0.0
        %429 = vmatpush1.xpose.msra.mxu0 0.0
        %430 = vmatprep.subr.mxu0 0.0
        %431 = vmatpush1.xpose.msra.mxu0 0.0
        %432 = vmatprep.subr.mxu0 0.0
        %433 = vmatpush1.xpose.msra.mxu0 0.0
        %434 = vmatprep.subr.mxu0 0.0
        %435 = vmatpush1.xpose.msra.mxu0 0.0
        %436 = vmatprep.subr.mxu0 0.0
        %437 = vmatpush1.xpose.msra.mxu0 0.0
        %438 = vmatprep.subr.mxu0 0.0
        %439 = vmatpush1.xpose.msra.mxu0 0.0
        %440 = vmatprep.subr.mxu0 0.0
        %441 = vmatpush1.xpose.msra.mxu0 0.0
        %442 = vmatprep.subr.mxu0 0.0
        %443 = vmatpush1.xpose.msra.mxu0 0.0
        %444 = vmatprep.subr.mxu0 0.0
        %445 = vmatpush1.xpose.msra.mxu0 0.0
        %446 = vmatprep.subr.mxu0 0.0
        %447 = vmatpush1.xpose.msra.mxu0 0.0
        %448 = vmatprep.subr.mxu0 0.0
        %449 = vmatpush1.xpose.msra.mxu0 0.0
        %450 = vmatprep.subr.mxu0 0.0
        %451 = vmatpush1.xpose.msra.mxu0 0.0
        %452 = vmatprep.subr.mxu0 0.0
        %453 = vmatpush1.xpose.msra.mxu0 0.0
        %454 = vmatprep.subr.mxu0 0.0
        %455 = vmatpush1.xpose.msra.mxu0 0.0
        %456 = vmatprep.subr.mxu0 0.0
        %457 = vmatpush1.xpose.msra.mxu0 0.0
        %458 = vmatprep.subr.mxu0 0.0
        %459 = vmatpush1.xpose.msra.mxu0 0.0
        %460 = vmatprep.subr.mxu0 0.0
        %461 = vmatpush1.xpose.msra.mxu0 0.0
        %462 = vmatprep.subr.mxu0 0.0
        %463 = vmatpush1.xpose.msra.mxu0 0.0
        %464 = vmatprep.subr.mxu0 0.0
        %465 = vmatpush1.xpose.msra.mxu0 0.0
        %466 = vmatprep.subr.mxu0 0.0
        %467 = vmatpush1.xpose.msra.mxu0 0.0
        %468 = vmatprep.subr.mxu0 0.0
        %469 = vmatpush1.xpose.msra.mxu0 0.0
        %470 = vmatprep.subr.mxu0 0.0
        %471 = vmatpush1.xpose.msra.mxu0 0.0
        %472 = vmatprep.subr.mxu0 0.0
        %473 = vmatpush1.xpose.msra.mxu0 0.0
        %474 = vmatprep.mubr.f32.mxu0 %v292
        %475 = vmatmul.mubr.f32.gmra.mrb[0].mxu0 %v291
        %v476 = vpop.f32.mrb[0].mxu0
        %v477 = vadd.f32 0.0, %v476
        %v478 = vpop.f32.mrb[0].mxu0
        %479 = vmatprep.mubr.f32.mxu0 %v294
        %480 = vmatmul.mubr.f32.gmra.mrb[0].mxu0 %v293
        %v481 = vpop.f32.mrb[0].mxu0
        %v482 = vadd.f32 0.0, %v481
        %v483 = vpop.f32.mrb[0].mxu0
        %484 = vdwg.mxu0
        %485 = vmatprep.subr.mxu0 %v320
        %486 = vmatpush1.xpose.msra.mxu0 %v319
        %487 = vmatprep.subr.mxu0 %v322
        %488 = vmatpush1.xpose.msra.mxu0 %v321
        %489 = vmatprep.subr.mxu0 %v324
        %490 = vmatpush1.xpose.msra.mxu0 %v323
        %491 = vmatprep.subr.mxu0 %v326
        %492 = vmatpush1.xpose.msra.mxu0 %v325
        %493 = vmatprep.subr.mxu0 0.0
        %494 = vmatpush1.xpose.msra.mxu0 0.0
        %495 = vmatprep.subr.mxu0 0.0
        %496 = vmatpush1.xpose.msra.mxu0 0.0
        %497 = vmatprep.subr.mxu0 0.0
        %498 = vmatpush1.xpose.msra.mxu0 0.0
        %499 = vmatprep.subr.mxu0 0.0
        %500 = vmatpush1.xpose.msra.mxu0 0.0
        %501 = vmatprep.subr.mxu0 0.0
        %502 = vmatpush1.xpose.msra.mxu0 0.0
        %503 = vmatprep.subr.mxu0 0.0
        %504 = vmatpush1.xpose.msra.mxu0 0.0
        %505 = vmatprep.subr.mxu0 0.0
        %506 = vmatpush1.xpose.msra.mxu0 0.0
        %507 = vmatprep.subr.mxu0 0.0
        %508 = vmatpush1.xpose.msra.mxu0 0.0
        %509 = vmatprep.subr.mxu0 0.0
        %510 = vmatpush1.xpose.msra.mxu0 0.0
        %511 = vmatprep.subr.mxu0 0.0
        %512 = vmatpush1.xpose.msra.mxu0 0.0
        %513 = vmatprep.subr.mxu0 0.0
        %514 = vmatpush1.xpose.msra.mxu0 0.0
        %515 = vmatprep.subr.mxu0 0.0
        %516 = vmatpush1.xpose.msra.mxu0 0.0
        %517 = vmatprep.subr.mxu0 0.0
        %518 = vmatpush1.xpose.msra.mxu0 0.0
        %519 = vmatprep.subr.mxu0 0.0
        %520 = vmatpush1.xpose.msra.mxu0 0.0
        %521 = vmatprep.subr.mxu0 0.0
        %522 = vmatpush1.xpose.msra.mxu0 0.0
        %523 = vmatprep.subr.mxu0 0.0
        %524 = vmatpush1.xpose.msra.mxu0 0.0
        %525 = vmatprep.subr.mxu0 0.0
        %526 = vmatpush1.xpose.msra.mxu0 0.0
        %527 = vmatprep.subr.mxu0 0.0
        %528 = vmatpush1.xpose.msra.mxu0 0.0
        %529 = vmatprep.subr.mxu0 0.0
        %530 = vmatpush1.xpose.msra.mxu0 0.0
        %531 = vmatprep.subr.mxu0 0.0
        %532 = vmatpush1.xpose.msra.mxu0 0.0
        %533 = vmatprep.subr.mxu0 0.0
        %534 = vmatpush1.xpose.msra.mxu0 0.0
        %535 = vmatprep.subr.mxu0 0.0
        %536 = vmatpush1.xpose.msra.mxu0 0.0
        %537 = vmatprep.subr.mxu0 0.0
        %538 = vmatpush1.xpose.msra.mxu0 0.0
        %539 = vmatprep.subr.mxu0 0.0
        %540 = vmatpush1.xpose.msra.mxu0 0.0
        %541 = vmatprep.subr.mxu0 0.0
        %542 = vmatpush1.xpose.msra.mxu0 0.0
        %543 = vmatprep.subr.mxu0 0.0
        %544 = vmatpush1.xpose.msra.mxu0 0.0
        %545 = vmatprep.subr.mxu0 0.0
        %546 = vmatpush1.xpose.msra.mxu0 0.0
        %547 = vmatprep.subr.mxu0 0.0
        %548 = vmatpush1.xpose.msra.mxu0 0.0
        %549 = vmatprep.mubr.f32.mxu0 %v296
        %550 = vmatmul.mubr.f32.gmra.mrb[0].mxu0 %v295
        %v551 = vpop.f32.mrb[0].mxu0
        %v552 = vadd.f32 0.0, %v551
        %v553 = vpop.f32.mrb[0].mxu0
        %554 = vmatprep.mubr.f32.mxu0 %v298
        %555 = vmatmul.mubr.f32.gmra.mrb[0].mxu0 %v297
        %v556 = vpop.f32.mrb[0].mxu0
        %v557 = vadd.f32 0.0, %v556
        %v558 = vpop.f32.mrb[0].mxu0
        %559 = vdwg.mxu0
        %560 = vmatprep.subr.mxu0 %v328
        %561 = vmatpush1.xpose.msra.mxu0 %v327
        %562 = vmatprep.subr.mxu0 %v330
        %563 = vmatpush1.xpose.msra.mxu0 %v329
        %564 = vmatprep.subr.mxu0 %v332
        %565 = vmatpush1.xpose.msra.mxu0 %v331
        %566 = vmatprep.subr.mxu0 %v334
        %567 = vmatpush1.xpose.msra.mxu0 %v333
        %568 = vmatprep.subr.mxu0 0.0
        %569 = vmatpush1.xpose.msra.mxu0 0.0
        %570 = vmatprep.subr.mxu0 0.0
        %571 = vmatpush1.xpose.msra.mxu0 0.0
        %572 = vmatprep.subr.mxu0 0.0
        %573 = vmatpush1.xpose.msra.mxu0 0.0
        %574 = vmatprep.subr.mxu0 0.0
        %575 = vmatpush1.xpose.msra.mxu0 0.0
        %576 = vmatprep.subr.mxu0 0.0
        %577 = vmatpush1.xpose.msra.mxu0 0.0
        %578 = vmatprep.subr.mxu0 0.0
        %579 = vmatpush1.xpose.msra.mxu0 0.0
        %580 = vmatprep.subr.mxu0 0.0
        %581 = vmatpush1.xpose.msra.mxu0 0.0
        %582 = vmatprep.subr.mxu0 0.0
        %583 = vmatpush1.xpose.msra.mxu0 0.0
        %584 = vmatprep.subr.mxu0 0.0
        %585 = vmatpush1.xpose.msra.mxu0 0.0
        %586 = vmatprep.subr.mxu0 0.0
        %587 = vmatpush1.xpose.msra.mxu0 0.0
        %588 = vmatprep.subr.mxu0 0.0
        %589 = vmatpush1.xpose.msra.mxu0 0.0
        %590 = vmatprep.subr.mxu0 0.0
        %591 = vmatpush1.xpose.msra.mxu0 0.0
        %592 = vmatprep.subr.mxu0 0.0
        %593 = vmatpush1.xpose.msra.mxu0 0.0
        %594 = vmatprep.subr.mxu0 0.0
        %595 = vmatpush1.xpose.msra.mxu0 0.0
        %596 = vmatprep.subr.mxu0 0.0
        %597 = vmatpush1.xpose.msra.mxu0 0.0
        %598 = vmatprep.subr.mxu0 0.0
        %599 = vmatpush1.xpose.msra.mxu0 0.0
        %600 = vmatprep.subr.mxu0 0.0
        %601 = vmatpush1.xpose.msra.mxu0 0.0
        %602 = vmatprep.subr.mxu0 0.0
        %603 = vmatpush1.xpose.msra.mxu0 0.0
        %604 = vmatprep.subr.mxu0 0.0
        %605 = vmatpush1.xpose.msra.mxu0 0.0
        %606 = vmatprep.subr.mxu0 0.0
        %607 = vmatpush1.xpose.msra.mxu0 0.0
        %608 = vmatprep.subr.mxu0 0.0
        %609 = vmatpush1.xpose.msra.mxu0 0.0
        %610 = vmatprep.subr.mxu0 0.0
        %611 = vmatpush1.xpose.msra.mxu0 0.0
        %612 = vmatprep.subr.mxu0 0.0
        %613 = vmatpush1.xpose.msra.mxu0 0.0
        %614 = vmatprep.subr.mxu0 0.0
        %615 = vmatpush1.xpose.msra.mxu0 0.0
        %616 = vmatprep.subr.mxu0 0.0
        %617 = vmatpush1.xpose.msra.mxu0 0.0
        %618 = vmatprep.subr.mxu0 0.0
        %619 = vmatpush1.xpose.msra.mxu0 0.0
        %620 = vmatprep.subr.mxu0 0.0
        %621 = vmatpush1.xpose.msra.mxu0 0.0
        %622 = vmatprep.subr.mxu0 0.0
        %623 = vmatpush1.xpose.msra.mxu0 0.0
        %624 = vmatprep.mubr.f32.mxu0 %v300
        %625 = vmatmul.mubr.f32.gmra.mrb[0].mxu0 %v299
        %v626 = vpop.f32.mrb[0].mxu0
        %v627 = vadd.f32 0.0, %v626
        %v628 = vpop.f32.mrb[0].mxu0
        %629 = vmatprep.mubr.f32.mxu0 %v302
        %630 = vmatmul.mubr.f32.gmra.mrb[0].mxu0 %v301
        %v631 = vpop.f32.mrb[0].mxu0
        %v632 = vadd.f32 0.0, %v631
        %v633 = vpop.f32.mrb[0].mxu0
        %634 = vdwg.mxu0
        %v635 = vld [vmem:[%s2] sm:$0xff]
        %v636 = vld [vmem:[%s2 + $0x8] sm:$0xff]
        %v637 = vld [vmem:[%s2 + $0x10] sm:$0xff]
        %v638 = vld [vmem:[%s2 + $0x18] sm:$0xff]
        %v639 = vld [vmem:[%s3] sm:$0x1]
        %v641 = vlaneseq
        %v642 = vshrl.u32 %v641, 7
        %v643 = vsub.s32 0, %v642
        %v644 = vrot.slane %v639, %v643
        %vm646 = vcmask 261120
        %v648 = vsel %vm646, %v402, 0
        %v651 = vsel %vm646, %v407, 0
        %v654 = vsel %vm646, %v477, 0
        %v657 = vsel %vm646, %v482, 0
        %v660 = vsel %vm646, %v552, 0
        %v663 = vsel %vm646, %v557, 0
        %v666 = vsel %vm646, %v627, 0
        %v669 = vsel %vm646, %v632, 0
        %671 = vmatprep.subr.mxu0 0.0
        %672 = vmatpush1.msra.mxu0 %v635
        %673 = vmatprep.subr.mxu0 0.0
        %674 = vmatpush1.msra.mxu0 %v636
        %675 = vmatprep.subr.mxu0 0.0
        %676 = vmatpush1.msra.mxu0 %v637
        %677 = vmatprep.subr.mxu0 0.0
        %678 = vmatpush1.msra.mxu0 %v638
        %679 = vmatprep.subr.mxu0 0.0
        %680 = vmatpush1.msra.mxu0 0.0
        %681 = vmatprep.subr.mxu0 0.0
        %682 = vmatpush1.msra.mxu0 0.0
        %683 = vmatprep.subr.mxu0 0.0
        %684 = vmatpush1.msra.mxu0 0.0
        %685 = vmatprep.subr.mxu0 0.0
        %686 = vmatpush1.msra.mxu0 0.0
        %687 = vmatprep.subr.mxu0 0.0
        %688 = vmatpush1.msra.mxu0 0.0
        %689 = vmatprep.subr.mxu0 0.0
        %690 = vmatpush1.msra.mxu0 0.0
        %691 = vmatprep.subr.mxu0 0.0
        %692 = vmatpush1.msra.mxu0 0.0
        %693 = vmatprep.subr.mxu0 0.0
        %694 = vmatpush1.msra.mxu0 0.0
        %695 = vmatprep.subr.mxu0 0.0
        %696 = vmatpush1.msra.mxu0 0.0
        %697 = vmatprep.subr.mxu0 0.0
        %698 = vmatpush1.msra.mxu0 0.0
        %699 = vmatprep.subr.mxu0 0.0
        %700 = vmatpush1.msra.mxu0 0.0
        %701 = vmatprep.subr.mxu0 0.0
        %702 = vmatpush1.msra.mxu0 0.0
        %703 = vmatprep.subr.mxu0 0.0
        %704 = vmatpush1.msra.mxu0 0.0
        %705 = vmatprep.subr.mxu0 0.0
        %706 = vmatpush1.msra.mxu0 0.0
        %707 = vmatprep.subr.mxu0 0.0
        %708 = vmatpush1.msra.mxu0 0.0
        %709 = vmatprep.subr.mxu0 0.0
        %710 = vmatpush1.msra.mxu0 0.0
        %711 = vmatprep.subr.mxu0 0.0
        %712 = vmatpush1.msra.mxu0 0.0
        %713 = vmatprep.subr.mxu0 0.0
        %714 = vmatpush1.msra.mxu0 0.0
        %715 = vmatprep.subr.mxu0 0.0
        %716 = vmatpush1.msra.mxu0 0.0
        %717 = vmatprep.subr.mxu0 0.0
        %718 = vmatpush1.msra.mxu0 0.0
        %719 = vmatprep.subr.mxu0 0.0
        %720 = vmatpush1.msra.mxu0 0.0
        %721 = vmatprep.subr.mxu0 0.0
        %722 = vmatpush1.msra.mxu0 0.0
        %723 = vmatprep.subr.mxu0 0.0
        %724 = vmatpush1.msra.mxu0 0.0
        %725 = vmatprep.subr.mxu0 0.0
        %726 = vmatpush1.msra.mxu0 0.0
        %727 = vmatprep.subr.mxu0 0.0
        %728 = vmatpush1.msra.mxu0 0.0
        %729 = vmatprep.subr.mxu0 0.0
        %730 = vmatpush1.msra.mxu0 0.0
        %731 = vmatprep.subr.mxu0 0.0
        %732 = vmatpush1.msra.mxu0 0.0
        %733 = vmatprep.subr.mxu0 0.0
        %734 = vmatpush1.msra.mxu0 0.0
        %735 = vmatprep.mubr.f32.mxu0 0.0
        %736 = vmatmul.mubr.f32.gmra.mrb[0].mxu0 %v648
        %v737 = vpop.f32.mrb[0].mxu0
        %v738 = vadd.f32 %v644, %v737
        %v739 = vpop.f32.mrb[0].mxu0
        %740 = vmatprep.mubr.f32.mxu0 0.0
        %741 = vmatmul.mubr.f32.gmra.mrb[0].mxu0 %v651
        %v742 = vpop.f32.mrb[0].mxu0
        %v743 = vadd.f32 %v644, %v742
        %v744 = vpop.f32.mrb[0].mxu0
        %745 = vmatprep.mubr.f32.mxu0 0.0
        %746 = vmatmul.mubr.f32.gmra.mrb[0].mxu0 %v654
        %v747 = vpop.f32.mrb[0].mxu0
        %v748 = vadd.f32 %v644, %v747
        %v749 = vpop.f32.mrb[0].mxu0
        %750 = vmatprep.mubr.f32.mxu0 0.0
        %751 = vmatmul.mubr.f32.gmra.mrb[0].mxu0 %v657
        %v752 = vpop.f32.mrb[0].mxu0
        %v753 = vadd.f32 %v644, %v752
        %v754 = vpop.f32.mrb[0].mxu0
        %755 = vmatprep.mubr.f32.mxu0 0.0
        %756 = vmatmul.mubr.f32.gmra.mrb[0].mxu0 %v660
        %v757 = vpop.f32.mrb[0].mxu0
        %v758 = vadd.f32 %v644, %v757
        %v759 = vpop.f32.mrb[0].mxu0
        %760 = vmatprep.mubr.f32.mxu0 0.0
        %761 = vmatmul.mubr.f32.gmra.mrb[0].mxu0 %v663
        %v762 = vpop.f32.mrb[0].mxu0
        %v763 = vadd.f32 %v644, %v762
        %v764 = vpop.f32.mrb[0].mxu0
        %765 = vmatprep.mubr.f32.mxu0 0.0
        %766 = vmatmul.mubr.f32.gmra.mrb[0].mxu0 %v666
        %v767 = vpop.f32.mrb[0].mxu0
        %v768 = vadd.f32 %v644, %v767
        %v769 = vpop.f32.mrb[0].mxu0
        %770 = vmatprep.mubr.f32.mxu0 0.0
        %771 = vmatmul.mubr.f32.gmra.mrb[0].mxu0 %v669
        %v772 = vpop.f32.mrb[0].mxu0
        %v773 = vadd.f32 %v644, %v772
        %v774 = vpop.f32.mrb[0].mxu0
        %775 = vdwg.mxu0
        %v776 = vmax.f32 %v738, 0.0
        %v777 = vmax.f32 %v743, 0.0
        %v778 = vmax.f32 %v748, 0.0
        %v779 = vmax.f32 %v753, 0.0
        %v780 = vmax.f32 %v758, 0.0
        %v781 = vmax.f32 %v763, 0.0
        %v782 = vmax.f32 %v768, 0.0
        %v783 = vmax.f32 %v773, 0.0
        %v784 = vld [vmem:[%s4] sm:$0xff]
        %v785 = vld [vmem:[%s4 + $0x8] sm:$0xff]
        %v786 = vld [vmem:[%s5] sm:$0x1]
        %v788 = vlaneseq
        %v789 = vshrl.u32 %v788, 7
        %v790 = vsub.s32 0, %v789
        %v791 = vrot.slane %v786, %v790
        %vm793 = vcmask 130048
        %v795 = vsel %vm793, %v776, 0
        %v798 = vsel %vm793, %v777, 0
        %v801 = vsel %vm793, %v778, 0
        %v804 = vsel %vm793, %v779, 0
        %v807 = vsel %vm793, %v780, 0
        %v810 = vsel %vm793, %v781, 0
        %v813 = vsel %vm793, %v782, 0
        %v816 = vsel %vm793, %v783, 0
        %818 = vmatprep.subr.mxu0 0.0
        %819 = vmatpush1.msra.mxu0 %v784
        %820 = vmatprep.subr.mxu0 0.0
        %821 = vmatpush1.msra.mxu0 %v785
        %822 = vmatprep.subr.mxu0 0.0
        %823 = vmatpush1.msra.mxu0 0.0
        %824 = vmatprep.subr.mxu0 0.0
        %825 = vmatpush1.msra.mxu0 0.0
        %826 = vmatprep.subr.mxu0 0.0
        %827 = vmatpush1.msra.mxu0 0.0
        %828 = vmatprep.subr.mxu0 0.0
        %829 = vmatpush1.msra.mxu0 0.0
        %830 = vmatprep.subr.mxu0 0.0
        %831 = vmatpush1.msra.mxu0 0.0
        %832 = vmatprep.subr.mxu0 0.0
        %833 = vmatpush1.msra.mxu0 0.0
        %834 = vmatprep.subr.mxu0 0.0
        %835 = vmatpush1.msra.mxu0 0.0
        %836 = vmatprep.subr.mxu0 0.0
        %837 = vmatpush1.msra.mxu0 0.0
        %838 = vmatprep.subr.mxu0 0.0
        %839 = vmatpush1.msra.mxu0 0.0
        %840 = vmatprep.subr.mxu0 0.0
        %841 = vmatpush1.msra.mxu0 0.0
        %842 = vmatprep.subr.mxu0 0.0
        %843 = vmatpush1.msra.mxu0 0.0
        %844 = vmatprep.subr.mxu0 0.0
        %845 = vmatpush1.msra.mxu0 0.0
        %846 = vmatprep.subr.mxu0 0.0
        %847 = vmatpush1.msra.mxu0 0.0
        %848 = vmatprep.subr.mxu0 0.0
        %849 = vmatpush1.msra.mxu0 0.0
        %850 = vmatprep.subr.mxu0 0.0
        %851 = vmatpush1.msra.mxu0 0.0
        %852 = vmatprep.subr.mxu0 0.0
        %853 = vmatpush1.msra.mxu0 0.0
        %854 = vmatprep.subr.mxu0 0.0
        %855 = vmatpush1.msra.mxu0 0.0
        %856 = vmatprep.subr.mxu0 0.0
        %857 = vmatpush1.msra.mxu0 0.0
        %858 = vmatprep.subr.mxu0 0.0
        %859 = vmatpush1.msra.mxu0 0.0
        %860 = vmatprep.subr.mxu0 0.0
        %861 = vmatpush1.msra.mxu0 0.0
        %862 = vmatprep.subr.mxu0 0.0
        %863 = vmatpush1.msra.mxu0 0.0
        %864 = vmatprep.subr.mxu0 0.0
        %865 = vmatpush1.msra.mxu0 0.0
        %866 = vmatprep.subr.mxu0 0.0
        %867 = vmatpush1.msra.mxu0 0.0
        %868 = vmatprep.subr.mxu0 0.0
        %869 = vmatpush1.msra.mxu0 0.0
        %870 = vmatprep.subr.mxu0 0.0
        %871 = vmatpush1.msra.mxu0 0.0
        %872 = vmatprep.subr.mxu0 0.0
        %873 = vmatpush1.msra.mxu0 0.0
        %874 = vmatprep.subr.mxu0 0.0
        %875 = vmatpush1.msra.mxu0 0.0
        %876 = vmatprep.subr.mxu0 0.0
        %877 = vmatpush1.msra.mxu0 0.0
        %878 = vmatprep.subr.mxu0 0.0
        %879 = vmatpush1.msra.mxu0 0.0
        %880 = vmatprep.subr.mxu0 0.0
        %881 = vmatpush1.msra.mxu0 0.0
        %882 = vmatprep.mubr.f32.mxu0 0.0
        %883 = vmatmul.mubr.f32.gmra.mrb[0].mxu0 %v795
        %v884 = vpop.f32.mrb[0].mxu0
        %v885 = vadd.f32 %v791, %v884
        %v886 = vpop.f32.mrb[0].mxu0
        %887 = vmatprep.mubr.f32.mxu0 0.0
        %888 = vmatmul.mubr.f32.gmra.mrb[0].mxu0 %v798
        %v889 = vpop.f32.mrb[0].mxu0
        %v890 = vadd.f32 %v791, %v889
        %v891 = vpop.f32.mrb[0].mxu0
        %892 = vmatprep.mubr.f32.mxu0 0.0
        %893 = vmatmul.mubr.f32.gmra.mrb[0].mxu0 %v801
        %v894 = vpop.f32.mrb[0].mxu0
        %v895 = vadd.f32 %v791, %v894
        %v896 = vpop.f32.mrb[0].mxu0
        %897 = vmatprep.mubr.f32.mxu0 0.0
        %898 = vmatmul.mubr.f32.gmra.mrb[0].mxu0 %v804
        %v899 = vpop.f32.mrb[0].mxu0
        %v900 = vadd.f32 %v791, %v899
        %v901 = vpop.f32.mrb[0].mxu0
        %902 = vmatprep.mubr.f32.mxu0 0.0
        %903 = vmatmul.mubr.f32.gmra.mrb[0].mxu0 %v807
        %v904 = vpop.f32.mrb[0].mxu0
        %v905 = vadd.f32 %v791, %v904
        %v906 = vpop.f32.mrb[0].mxu0
        %907 = vmatprep.mubr.f32.mxu0 0.0
        %908 = vmatmul.mubr.f32.gmra.mrb[0].mxu0 %v810
        %v909 = vpop.f32.mrb[0].mxu0
        %v910 = vadd.f32 %v791, %v909
        %v911 = vpop.f32.mrb[0].mxu0
        %912 = vmatprep.mubr.f32.mxu0 0.0
        %913 = vmatmul.mubr.f32.gmra.mrb[0].mxu0 %v813
        %v914 = vpop.f32.mrb[0].mxu0
        %v915 = vadd.f32 %v791, %v914
        %v916 = vpop.f32.mrb[0].mxu0
        %917 = vmatprep.mubr.f32.mxu0 0.0
        %918 = vmatmul.mubr.f32.gmra.mrb[0].mxu0 %v816
        %v919 = vpop.f32.mrb[0].mxu0
        %v920 = vadd.f32 %v791, %v919
        %v921 = vpop.f32.mrb[0].mxu0
        %922 = vdwg.mxu0
        %v923 = vxor.u32 %v885, 2147483648
        %v924 = vxor.u32 %v890, 2147483648
        %v925 = vxor.u32 %v895, 2147483648
        %v926 = vxor.u32 %v900, 2147483648
        %v927 = vxor.u32 %v905, 2147483648
        %v928 = vxor.u32 %v910, 2147483648
        %v929 = vxor.u32 %v915, 2147483648
        %v930 = vxor.u32 %v920, 2147483648
        %v931 = vmul.f32 %v923, 1.442695
        %v932 = vpow.pop %v931
        %v933 = vmul.f32 %v924, 1.442695
        %v934 = vpow.pop %v933
        %v935 = vmul.f32 %v925, 1.442695
        %v936 = vpow.pop %v935
        %v937 = vmul.f32 %v926, 1.442695
        %v938 = vpow.pop %v937
        %v939 = vmul.f32 %v927, 1.442695
        %v940 = vpow.pop %v939
        %v941 = vmul.f32 %v928, 1.442695
        %v942 = vpow.pop %v941
        %v943 = vmul.f32 %v929, 1.442695
        %v944 = vpow.pop %v943
        %v945 = vmul.f32 %v930, 1.442695
        %v946 = vpow.pop %v945
        %v947 = vadd.f32 %v932, 1.0
        %v948 = vadd.f32 %v934, 1.0
        %v949 = vadd.f32 %v936, 1.0
        %v950 = vadd.f32 %v938, 1.0
        %v951 = vadd.f32 %v940, 1.0
        %v952 = vadd.f32 %v942, 1.0
        %v953 = vadd.f32 %v944, 1.0
        %v954 = vadd.f32 %v946, 1.0
        %v955 = vrcp.pop %v947
        %v956 = vmul.f32 1.0, %v955
        %v957 = vrcp.pop %v948
        %v958 = vmul.f32 1.0, %v957
        %v959 = vrcp.pop %v949
        %v960 = vmul.f32 1.0, %v959
        %v961 = vrcp.pop %v950
        %v962 = vmul.f32 1.0, %v961
        %v963 = vrcp.pop %v951
        %v964 = vmul.f32 1.0, %v963
        %v965 = vrcp.pop %v952
        %v966 = vmul.f32 1.0, %v965
        %v967 = vrcp.pop %v953
        %v968 = vmul.f32 1.0, %v967
        %v969 = vrcp.pop %v954
        %v970 = vmul.f32 1.0, %v969
        %979 = vrot.lane.b32.xlu0 %v956, 96
        %v980 = vpop.permute.xlu0 %979
        %981 = vrot.lane.b32.xlu0 %v958, 96
        %v982 = vpop.permute.xlu0 %981
        %983 = vrot.lane.b32.xlu0 %v960, 96
        %v984 = vpop.permute.xlu0 %983
        %985 = vrot.lane.b32.xlu0 %v962, 96
        %v986 = vpop.permute.xlu0 %985
        %987 = vrot.lane.b32.xlu0 %v964, 96
        %v988 = vpop.permute.xlu0 %987
        %989 = vrot.lane.b32.xlu0 %v966, 96
        %v990 = vpop.permute.xlu0 %989
        %991 = vrot.lane.b32.xlu0 %v968, 96
        %v992 = vpop.permute.xlu0 %991
        %993 = vrot.lane.b32.xlu0 %v970, 96
        %v994 = vpop.permute.xlu0 %993
        %v1003 = vmul.f32 %v956, %v980
        %v1004 = vmul.f32 %v958, %v982
        %v1005 = vmul.f32 %v960, %v984
        %v1006 = vmul.f32 %v962, %v986
        %v1007 = vmul.f32 %v964, %v988
        %v1008 = vmul.f32 %v966, %v990
        %v1009 = vmul.f32 %v968, %v992
        %v1010 = vmul.f32 %v970, %v994
        %v1011 = vsel %vm646, %v1003, 0.0
        %v1012 = vsel %vm646, %v1004, 0.0
        %v1013 = vadd.f32 %v1011, %v1012
        %v1014 = vrot.slane %v1013, 4
        %v1015 = vadd.f32 %v1013, %v1014
        %v1016 = vrot.slane %v1015, 2
        %v1017 = vadd.f32 %v1015, %v1016
        %v1018 = vrot.slane %v1017, 1
        %v1019 = vadd.f32 %v1017, %v1018
        %v1020 = vsel %vm646, %v1005, 0.0
        %v1021 = vsel %vm646, %v1006, 0.0
        %v1022 = vadd.f32 %v1020, %v1021
        %v1023 = vrot.slane %v1022, 4
        %v1024 = vadd.f32 %v1022, %v1023
        %v1025 = vrot.slane %v1024, 2
        %v1026 = vadd.f32 %v1024, %v1025
        %v1027 = vrot.slane %v1026, 1
        %v1028 = vadd.f32 %v1026, %v1027
        %v1029 = vsel %vm646, %v1007, 0.0
        %v1030 = vsel %vm646, %v1008, 0.0
        %v1031 = vadd.f32 %v1029, %v1030
        %v1032 = vrot.slane %v1031, 4
        %v1033 = vadd.f32 %v1031, %v1032
        %v1034 = vrot.slane %v1033, 2
        %v1035 = vadd.f32 %v1033, %v1034
        %v1036 = vrot.slane %v1035, 1
        %v1037 = vadd.f32 %v1035, %v1036
        %v1038 = vsel %vm646, %v1009, 0.0
        %v1039 = vsel %vm646, %v1010, 0.0
        %v1040 = vadd.f32 %v1038, %v1039
        %v1041 = vrot.slane %v1040, 4
        %v1042 = vadd.f32 %v1040, %v1041
        %v1043 = vrot.slane %v1042, 2
        %v1044 = vadd.f32 %v1042, %v1043
        %v1045 = vrot.slane %v1044, 1
        %v1046 = vadd.f32 %v1044, %v1045
        %vm1051 = vcmask 1041409
        %v1052 = vsel %vm1051, %v1028, %v1019
        %vm1053 = vcmask 1042434
        %v1054 = vsel %vm1053, %v1037, %v1052
        %vm1055 = vcmask 1043459
        %v1056 = vsel %vm1055, %v1046, %v1054
        %vm1058 = vcmask 257024
        %1059 = vst.msk [vmem:[%s285] sm:$0xf] %vm1058, %v1056
        %s1060 = sand.u32 %s163, 1
        %s1061 = scalar_lea.sflag [#allocation4], %s1060
        %s1062 = sand.u32 %s163, 1
        %s1063 = smul.addr %s1062, 4
        %s1064 = scalar_lea.vmem [#allocation7], %s1063
        // Predicated region
        $region53: #{tpu_custom_call.1} parent=43 // pred_check
          %p1065 = pneg %p173
        $region54: #{tpu_custom_call.1} parent=43 // pred_check_branch
          %1067 = sbr.rel (%p1065) target = $region56
        $region55: #{tpu_custom_call.1} parent=43 // pred_region
          %s1069 = ssub.s32 64, 64
          %1070 = vsyncadd %s1061, %s1069
          %s1071 = smul.addr %s24, 64
          %s1072 = scalar_lea.hbm %s6, %s1071
          %s1074 = sshll.u32 %s1064, 4
          %s1075 = int_to_ptr.vmem [resolvable:$true] %s1074
          %1077 = dma.vmem_to_hbm [thread:$0]  %s1075, 64, %s1072, %s1061
        $region56: #{tpu_custom_call.1} parent=43 // pred_fallthru
          _
      $region44: #{tpu_custom_call.1} parent=5 // pred_fallthru
        _
      %p1078 = scmp.le.s32.totalorder 2, %s19
      // Predicated region
      $region57: #{tpu_custom_call.1} parent=5 // pred_check
        %p1079 = pneg %p1078
      $region58: #{tpu_custom_call.1} parent=5 // pred_check_branch
        %1081 = sbr.rel (%p1079) target = $region60
      $region59: #{tpu_custom_call.1} parent=5 // pred_region
        %s1082 = ssub.s32 %s19, 2
        // Predicated region
        $region61: #{tpu_custom_call.1} parent=59 // pred_check
          %p1083 = pneg %p179
        $region62: #{tpu_custom_call.1} parent=59 // pred_check_branch
          %1085 = sbr.rel (%p1083) target = $region64
        $region63: #{tpu_custom_call.1} parent=59 // pred_region
          %s1086 = sand.u32 %s164, 1
          %s1087 = scalar_lea.sflag [#allocation4], %s1086
          %s1088 = sand.u32 %s164, 1
          %s1089 = smul.addr %s1088, 4
          %s1090 = scalar_lea.vmem [#allocation7], %s1089
          %1091 = dma.done %s1087, 64
        $region64: #{tpu_custom_call.1} parent=59 // pred_fallthru
          _
      $region60: #{tpu_custom_call.1} parent=5 // pred_fallthru
        _
    $region6: #{tpu_custom_call.1} parent=1 // loop_footer
      %s23 = sadd.s32 1, %s19
    $region7: #{tpu_custom_call.1} parent=1 // loop_footer_branch
      %18 = sbr.rel target = $region3
    $region8: #{tpu_custom_call.1} parent=1 // loop_exit
      _
    %1092 = vsyncpa [#allocation3], 1
    %s1093 = scalar_lea.sflag [#allocation3], 1
    %1094 = vsyncpa %s1093, 1
    %1095 = vsyncpa [#allocation6], 1
    %1096 = vsyncpa [#allocation4], 1
    %s1097 = scalar_lea.sflag [#allocation4], 1
    %1098 = vsyncpa %s1097, 1

</llo_original>
